<compile_context>
chip_gen: v7x
topology: tpu7x:2x2x1
jax: 0.10.0
libtpu: 0.0.40
codegen_flags: <defaults>
</compile_context>

<pallas_src>
import functools

import numpy as np
import jax
import jax.numpy as jnp
from jax import lax
from jax.experimental import pallas as pl
from jax.experimental.pallas import tpu as pltpu

_MIB = 1024 * 1024


def _vmem_capacity_bytes():
    """Physical VMEM per core (generation-aware); conservative fallback."""
    try:
        return int(pltpu.get_tpu_info().vmem_capacity_bytes)
    except Exception:
        return 64 * _MIB


def _vmem_limit(est_bytes, cap_bytes):
    """Scoped-VMEM cap sized from estimated buffer usage, with headroom."""
    return int(max(32 * _MIB, min(cap_bytes - 8 * _MIB, est_bytes + 24 * _MIB)))


def _choose_tl(C, L, itemsize, cap_bytes, tile_bytes=None):
    """Lane-dense (multiple-of-128) tile length along L.

    Sized so the streamed normalize kernel's working set (x + out double-
    buffered + ~4 f32 temps) stays inside a generation-aware VMEM budget.
    """
    budget = max(16 * _MIB, min(cap_bytes - 24 * _MIB, 100 * _MIB))
    per_elem = 4 * itemsize + 16                 # 2x in + 2x out bufs + f32 temps
    max_elems = max(budget // per_elem, 8 * 128)
    if tile_bytes is None:
        tile_bytes = 8 * _MIB                    # big tiles: amortize grid-step overhead
    target_elems = max(tile_bytes // itemsize, 128)
    per_c = max(min(target_elems, max_elems) // max(C, 1), 128)
    tl = max((per_c // 128) * 128, 128)
    tl = min(tl, pl.cdiv(L, 128) * 128)          # never wider than (padded) L
    # TODO(synk): also tile the channel axis if C*128*itemsize alone exceeds the budget.
    return int(tl)


# --------------------------------------------------------------------------
# Streamed kernel 1: per-(batch, L-chunk) per-channel sum / sum-of-squares
# --------------------------------------------------------------------------
def _stats_kernel(x_ref, sum_ref, sumsq_ref, *, n_cols, rem, mask_last):
    """x block (1, C, TL); outputs (1, 1, C, 128) lane-dense partial sums,
    resident across the (arbitrary) L-tile axis.  Pure VALU column adds; the
    final 128-lane fold happens in plain JAX on tiny arrays."""
    t = pl.program_id(2)

    @pl.when(t == 0)
    def _init():
        sum_ref[...] = jnp.zeros_like(sum_ref)
        sumsq_ref[...] = jnp.zeros_like(sumsq_ref)

    def add_col(col):
        sum_ref[0, 0, :, :] += col
        sumsq_ref[0, 0, :, :] += col * col

    def add_full_cols(lo, hi):
        def body(m, carry):
            sl = pl.ds(pl.multiple_of(m * 128, 128), 128)
            add_col(x_ref[0, :, sl].astype(jnp.float32))
            return carry
        lax.fori_loop(lo, hi, body, 0, unroll=bool(hi - lo <= 16))

    if not mask_last:
        add_full_cols(0, n_cols)
    else:
        is_last = jnp.logical_and(pl.program_id(1) == pl.num_programs(1) - 1,
                                  t == pl.num_programs(2) - 1)

        @pl.when(jnp.logical_not(is_last))
        def _fast():                      # fully valid tiles: unmasked fast path
            add_full_cols(0, n_cols)

        @pl.when(is_last)
        def _tail():                      # only the globally-last tile pays the mask
            n_full = rem // 128
            if n_full > 0:
                add_full_cols(0, n_full)
            part = rem % 128
            if part > 0:
                sl = pl.ds(n_full * 128, 128)
                col = x_ref[0, :, sl].astype(jnp.float32)
                lane = lax.broadcasted_iota(jnp.int32, (1, 128), 1)
                add_col(jnp.where(lane < part, col, 0.0))


def compute_stats(x, tl, cap_bytes):
    """x: (B, C, L) -> (mean, mean_sq), each (1, C, 1) float32."""
    B, C, L = x.shape
    n_l = pl.cdiv(L, tl)
    # Split the L reduction into P parallel chunks so both v7x TensorCores get
    # work even when B is small; the extra partials are trivial on v5e/v6e.
    P = 2 if (n_l >= 2 and n_l % 2 == 0) else 1
    T = n_l // P
    rem = L - (n_l - 1) * tl
    kernel = functools.partial(_stats_kernel, n_cols=tl // 128, rem=rem,
                               mask_last=(rem != tl))
    est = (2 * C * tl * x.dtype.itemsize        # x double-buffered
           + 8 * C * 128 * 4                    # 2 partial outputs x 2 buffers
           + 4 * C * 128 * 4)                   # column temps
    sums, sumsqs = pl.pallas_call(
        kernel,
        out_shape=(jax.ShapeDtypeStruct((B, P, C, 128), jnp.float32),
                   jax.ShapeDtypeStruct((B, P, C, 128), jnp.float32)),
        grid_spec=pltpu.PrefetchScalarGridSpec(
            num_scalar_prefetch=0,
            grid=(B, P, T),
            in_specs=[pl.BlockSpec((1, C, tl), lambda b, p, t: (b, 0, p * T + t))],
            out_specs=(
                pl.BlockSpec((1, 1, C, 128), lambda b, p, t: (b, p, 0, 0)),
                pl.BlockSpec((1, 1, C, 128), lambda b, p, t: (b, p, 0, 0)),
            ),
        ),
        compiler_params=pltpu.CompilerParams(
            dimension_semantics=("parallel", "parallel", "arbitrary"),
            vmem_limit_bytes=_vmem_limit(est, cap_bytes),
        ),
    )(x)
    inv_count = 1.0 / float(B * L)
    mean = jnp.sum(sums, axis=(0, 1, 3)).reshape(1, C, 1) * inv_count
    mean_sq = jnp.sum(sumsqs, axis=(0, 1, 3)).reshape(1, C, 1) * inv_count
    return mean, mean_sq


# --------------------------------------------------------------------------
# Streamed kernel 2: elementwise normalize with folded per-channel scale/shift
# --------------------------------------------------------------------------
def _normalize_kernel(x_ref, scale_ref, shift_ref, o_ref):
    x = x_ref[...].astype(jnp.float32)                    # (1, C, TL)
    # Padded tail of the last tile may hold garbage; those output writes are
    # clipped by Pallas (invariant: out block == in block along L).
    o_ref[...] = (x * scale_ref[...] + shift_ref[...]).astype(o_ref.dtype)


def normalize(x, scale, shift, tl, cap_bytes):
    """x: (B, C, L); scale/shift: (C, 1) f32 -> (B, C, L) in x.dtype."""
    B, C, L = x.shape
    n_l = pl.cdiv(L, tl)
    est = 4 * C * tl * x.dtype.itemsize + 4 * C * tl * 4 + 2 * C * 128 * 4
    return pl.pallas_call(
        _normalize_kernel,
        out_shape=jax.ShapeDtypeStruct((B, C, L), x.dtype),
        grid_spec=pltpu.PrefetchScalarGridSpec(
            num_scalar_prefetch=0,
            grid=(B, n_l),
            in_specs=[
                pl.BlockSpec((1, C, tl), lambda b, j: (b, 0, j)),   # x tile
                pl.BlockSpec((C, 1), lambda b, j: (0, 0)),          # scale (resident)
                pl.BlockSpec((C, 1), lambda b, j: (0, 0)),          # shift (resident)
            ],
            out_specs=pl.BlockSpec((1, C, tl), lambda b, j: (b, 0, j)),
        ),
        compiler_params=pltpu.CompilerParams(
            dimension_semantics=("parallel", "parallel"),
            vmem_limit_bytes=_vmem_limit(est, cap_bytes),
        ),
    )(x, scale, shift)


# --------------------------------------------------------------------------
# Fused single-pass kernel: stats + blend + normalize (x resident in VMEM)
# --------------------------------------------------------------------------
def _fused_kernel(x_ref, gamma_ref, beta_ref, refm_ref, refq_ref,
                  o_ref, mean_ref, msq_ref, *,
                  eps, inv_count, blend, new_coeff, old_coeff):
    x = x_ref[...].astype(jnp.float32)                    # (B, C, L)
    s = jnp.sum(jnp.sum(x, axis=2, keepdims=True), axis=0, keepdims=True)
    q = jnp.sum(jnp.sum(x * x, axis=2, keepdims=True), axis=0, keepdims=True)
    mean = s * inv_count                                  # (1, C, 1)
    msq = q * inv_count
    if blend:
        mean = new_coeff * mean + old_coeff * refm_ref[...]
        msq = new_coeff * msq + old_coeff * refq_ref[...]
    mean_ref[...] = mean
    msq_ref[...] = msq
    var = eps + jnp.maximum(msq - mean * mean, 0.0)
    inv_std = 1.0 / jnp.sqrt(var)
    scale = gamma_ref[...] * inv_std
    shift = beta_ref[...] - mean * scale
    o_ref[...] = (x * scale + shift).astype(o_ref.dtype)


def fused_vbn(x, gamma, beta, ref_mean, ref_mean_sq, eps, blend, cap_bytes, est):
    B, C, L = x.shape
    new_coeff = 1.0 / (B + 1.0)
    kernel = functools.partial(
        _fused_kernel, eps=float(eps), inv_count=1.0 / float(B * L),
        blend=blend, new_coeff=new_coeff, old_coeff=1.0 - new_coeff)
    small = jax.ShapeDtypeStruct((1, C, 1), jnp.float32)
    return pl.pallas_call(
        kernel,
        out_shape=(jax.ShapeDtypeStruct((B, C, L), x.dtype), small, small),
        grid_spec=pltpu.PrefetchScalarGridSpec(
            num_scalar_prefetch=0,
            grid=(1,),
            in_specs=[
                pl.BlockSpec((B, C, L), lambda i: (0, 0, 0)),
                pl.BlockSpec((1, C, 1), lambda i: (0, 0, 0)),
                pl.BlockSpec((1, C, 1), lambda i: (0, 0, 0)),
                pl.BlockSpec((1, C, 1), lambda i: (0, 0, 0)),
                pl.BlockSpec((1, C, 1), lambda i: (0, 0, 0)),
            ],
            out_specs=(
                pl.BlockSpec((B, C, L), lambda i: (0, 0, 0)),
                pl.BlockSpec((1, C, 1), lambda i: (0, 0, 0)),
                pl.BlockSpec((1, C, 1), lambda i: (0, 0, 0)),
            ),
        ),
        compiler_params=pltpu.CompilerParams(
            dimension_semantics=("arbitrary",),
            vmem_limit_bytes=_vmem_limit(est, cap_bytes),
        ),
    )(x, gamma, beta, ref_mean, ref_mean_sq)


# --------------------------------------------------------------------------
# Module wrapper
# --------------------------------------------------------------------------
class VirtualBatchNorm1d:
    def __init__(self, num_features, eps=1e-5):
        self.num_features = num_features
        self.eps = eps
        rng = np.random.default_rng(0)   # matches torch init distribution
        self.gamma = jnp.asarray(
            rng.normal(1.0, 0.02, size=(1, num_features, 1)), dtype=jnp.float32)
        self.beta = jnp.zeros((1, num_features, 1), jnp.float32)

    def __call__(self, x, ref_mean=None, ref_mean_sq=None,
                 use_fused=None, tile_bytes=None):
        assert x.ndim == 3
        B, C, L = x.shape
        assert C == self.num_features

        cap = _vmem_capacity_bytes()
        blend = (ref_mean is not None) and (ref_mean_sq is not None)

        in_bytes = B * C * L * x.dtype.itemsize
        f32_bytes = B * C * L * 4
        fused_est = 4 * in_bytes + 4 * f32_bytes           # in/out double-buffered + temps
        if use_fused is None:
            use_fused = fused_est <= cap - 24 * _MIB       # generation-aware gate

        if use_fused:
            refm = (ref_mean if blend else jnp.zeros((1, C, 1), jnp.float32))
            refq = (ref_mean_sq if blend else jnp.zeros((1, C, 1), jnp.float32))
            refm = jnp.asarray(refm, jnp.float32).reshape(1, C, 1)
            refq = jnp.asarray(refq, jnp.float32).reshape(1, C, 1)
            out, mean, mean_sq = fused_vbn(x, self.gamma, self.beta, refm, refq,
                                           self.eps, blend, cap, fused_est)
            return out, mean, mean_sq

        # Streamed two-kernel path (x too large to keep resident in VMEM).
        tl = _choose_tl(C, L, x.dtype.itemsize, cap, tile_bytes)
        mean, mean_sq = compute_stats(x, tl, cap)
        if blend:
            new_coeff = 1.0 / (B + 1.0)
            old_coeff = 1.0 - new_coeff
            mean = new_coeff * mean + old_coeff * ref_mean
            mean_sq = new_coeff * mean_sq + old_coeff * ref_mean_sq

        # Fold stats + affine into per-channel scale/shift: hot loop is one FMA.
        var = self.eps + jnp.maximum(mean_sq - mean * mean, 0.0)
        inv_std = 1.0 / jnp.sqrt(var)                      # (1, C, 1)
        scale = (self.gamma * inv_std).reshape(C, 1).astype(jnp.float32)
        shift = (self.beta - mean * self.gamma * inv_std).reshape(C, 1).astype(jnp.float32)
        out = normalize(x, scale, shift, tl, cap)
        return out, mean, mean_sq


# --------------------------------------------------------------------------
# Pure-JAX reference (matches the PyTorch module) for verification
# --------------------------------------------------------------------------
def _ref_forward(x, gamma, beta, eps, ref_mean=None, ref_mean_sq=None):
    x = x.astype(jnp.float32)
    mean = jnp.mean(jnp.mean(x, axis=2, keepdims=True), axis=0, keepdims=True)
    mean_sq = jnp.mean(jnp.mean(x * x, axis=2, keepdims=True), axis=0, keepdims=True)
    if ref_mean is not None and ref_mean_sq is not None:
        new_coeff = 1.0 / (x.shape[0] + 1.0)
        old_coeff = 1.0 - new_coeff
        mean = new_coeff * mean + old_coeff * ref_mean
        mean_sq = new_coeff * mean_sq + old_coeff * ref_mean_sq
    std = jnp.sqrt(eps + mean_sq - mean ** 2)
    out = (x - mean) / std * gamma + beta
    return out, mean, mean_sq


def _run_case(B, C, L, dtype, out_atol, stat_atol, use_fused=None, tile_bytes=None):
    key = jax.random.PRNGKey(0)
    k_ref, k_x = jax.random.split(key)
    x_reference = jax.random.normal(k_ref, (B, C, L), dtype=jnp.float32).astype(dtype)
    x_train = jax.random.normal(k_x, (B, C, L), dtype=jnp.float32).astype(dtype)

    vbn = VirtualBatchNorm1d(num_features=C)

    # Pass 1: reference batch (ref stats are None); pass 2: blended train batch.
    out_ref_pass, ref_mean, ref_mean_sq = vbn(x_reference, None, None,
                                              use_fused=use_fused, tile_bytes=tile_bytes)
    out_train, mean, mean_sq = vbn(x_train, ref_mean, ref_mean_sq,
                                   use_fused=use_fused, tile_bytes=tile_bytes)
    jax.block_until_ready((out_ref_pass, out_train, mean, mean_sq))

    exp_ref_out, exp_ref_mean, exp_ref_msq = _ref_forward(
        x_reference, vbn.gamma, vbn.beta, vbn.eps)
    exp_train_out, exp_mean, exp_msq = _ref_forward(
        x_train, vbn.gamma, vbn.beta, vbn.eps, exp_ref_mean, exp_ref_msq)

    assert np.allclose(np.asarray(out_ref_pass, dtype=np.float32),
                       np.asarray(exp_ref_out), atol=out_atol), "ref-pass output mismatch"
    assert np.allclose(np.asarray(out_train, dtype=np.float32),
                       np.asarray(exp_train_out), atol=out_atol), "train-pass output mismatch"
    assert np.allclose(np.asarray(mean), np.asarray(exp_mean), atol=stat_atol), "mean mismatch"
    assert np.allclose(np.asarray(mean_sq), np.asarray(exp_msq), atol=stat_atol), "mean_sq mismatch"


if __name__ == "__main__":
    # 1) Small case (NCL as in the module) -> fused single-pass path.
    _run_case(B=2, C=4, L=16, dtype=jnp.float32, out_atol=1e-5, stat_atol=1e-6)
    # 2) Streamed path, bf16, forced small tiles: multi-tile L, parallel P=2
    #    chunk split, and a masked partial last tile (L % tl != 0).
    _run_case(B=2, C=64, L=17500, dtype=jnp.bfloat16, out_atol=5e-2, stat_atol=5e-3,
              use_fused=False, tile_bytes=128 * 1024)
    # 3) Streamed path, f32, exact tiling (no mask), odd batch, P=2 split.
    _run_case(B=3, C=16, L=4096, dtype=jnp.float32, out_atol=1e-4, stat_atol=1e-5,
              use_fused=False, tile_bytes=64 * 1024)
    print("KERNEL_OK")
</pallas_src>

<mosaic_0001>
module attributes {stable_mosaic.version = 11 : i64} {
  func.func @_fused_kernel(%arg0: i32, %arg1: memref<2x4x16xf32, #tpu.memory_space<vmem>>, %arg2: memref<1x4x1xf32, #tpu.memory_space<vmem>>, %arg3: memref<1x4x1xf32, #tpu.memory_space<vmem>>, %arg4: memref<1x4x1xf32, #tpu.memory_space<vmem>>, %arg5: memref<1x4x1xf32, #tpu.memory_space<vmem>>, %arg6: memref<2x4x16xf32, #tpu.memory_space<vmem>>, %arg7: memref<1x4x1xf32, #tpu.memory_space<vmem>>, %arg8: memref<1x4x1xf32, #tpu.memory_space<vmem>>) attributes {dimension_semantics = [#tpu.dimension_semantics<arbitrary>], iteration_bounds = array<i64: 1>, scalar_prefetch = 0 : i64, scratch_operands = 0 : i64, tpu.core_type = #tpu.core_type<tc>, window_params = [{pipeline_mode = #tpu.pipeline_mode<synchronous>, transform_indices = @transform_0, window_bounds = array<i64: 2, 4, 16>}, {pipeline_mode = #tpu.pipeline_mode<synchronous>, transform_indices = @transform_1, window_bounds = array<i64: 1, 4, 1>}, {pipeline_mode = #tpu.pipeline_mode<synchronous>, transform_indices = @transform_2, window_bounds = array<i64: 1, 4, 1>}, {pipeline_mode = #tpu.pipeline_mode<synchronous>, transform_indices = @transform_3, window_bounds = array<i64: 1, 4, 1>}, {pipeline_mode = #tpu.pipeline_mode<synchronous>, transform_indices = @transform_4, window_bounds = array<i64: 1, 4, 1>}, {pipeline_mode = #tpu.pipeline_mode<synchronous>, transform_indices = @transform_5, window_bounds = array<i64: 2, 4, 16>}, {pipeline_mode = #tpu.pipeline_mode<synchronous>, transform_indices = @transform_6, window_bounds = array<i64: 1, 4, 1>}, {pipeline_mode = #tpu.pipeline_mode<synchronous>, transform_indices = @transform_7, window_bounds = array<i64: 1, 4, 1>}]} {
    %c0 = arith.constant 0 : index
    %c0_0 = arith.constant 0 : index
    %c0_1 = arith.constant 0 : index
    %0 = vector.load %arg1[%c0, %c0_0, %c0_1] : memref<2x4x16xf32, #tpu.memory_space<vmem>>, vector<2x4x16xf32>
    %cst = arith.constant dense<0.000000e+00> : vector<2x4xf32>
    %1 = vector.multi_reduction <add>, %0, %cst [2] : vector<2x4x16xf32> to vector<2x4xf32>
    %2 = vector.shape_cast %1 : vector<2x4xf32> to vector<2x4x1xf32>
    %cst_2 = arith.constant dense<0.000000e+00> : vector<4x1xf32>
    %3 = vector.multi_reduction <add>, %2, %cst_2 [0] : vector<2x4x1xf32> to vector<4x1xf32>
    %4 = vector.shape_cast %3 : vector<4x1xf32> to vector<1x4x1xf32>
    %5 = arith.mulf %0, %0 : vector<2x4x16xf32>
    %cst_3 = arith.constant dense<0.000000e+00> : vector<2x4xf32>
    %6 = vector.multi_reduction <add>, %5, %cst_3 [2] : vector<2x4x16xf32> to vector<2x4xf32>
    %7 = vector.shape_cast %6 : vector<2x4xf32> to vector<2x4x1xf32>
    %cst_4 = arith.constant dense<0.000000e+00> : vector<4x1xf32>
    %8 = vector.multi_reduction <add>, %7, %cst_4 [0] : vector<2x4x1xf32> to vector<4x1xf32>
    %9 = vector.shape_cast %8 : vector<4x1xf32> to vector<1x4x1xf32>
    %cst_5 = arith.constant 3.125000e-02 : f32
    %10 = vector.broadcast %cst_5 : f32 to vector<1x4x1xf32>
    %11 = arith.mulf %4, %10 : vector<1x4x1xf32>
    %cst_6 = arith.constant 3.125000e-02 : f32
    %12 = vector.broadcast %cst_6 : f32 to vector<1x4x1xf32>
    %13 = arith.mulf %9, %12 : vector<1x4x1xf32>
    %c0_7 = arith.constant 0 : index
    %c0_8 = arith.constant 0 : index
    %c0_9 = arith.constant 0 : index
    %14 = vector.load %arg7[%c0_7, %c0_8, %c0_9] : memref<1x4x1xf32, #tpu.memory_space<vmem>>, vector<1x4x1xf32>
    tpu.vector_store %arg7[%c0_7, %c0_8, %c0_9], %11 {strides = array<i32>} : memref<1x4x1xf32, #tpu.memory_space<vmem>>, vector<1x4x1xf32>,
    %c0_10 = arith.constant 0 : index
    %c0_11 = arith.constant 0 : index
    %c0_12 = arith.constant 0 : index
    %15 = vector.load %arg8[%c0_10, %c0_11, %c0_12] : memref<1x4x1xf32, #tpu.memory_space<vmem>>, vector<1x4x1xf32>
    tpu.vector_store %arg8[%c0_10, %c0_11, %c0_12], %13 {strides = array<i32>} : memref<1x4x1xf32, #tpu.memory_space<vmem>>, vector<1x4x1xf32>,
    %16 = arith.mulf %11, %11 : vector<1x4x1xf32>
    %17 = arith.subf %13, %16 : vector<1x4x1xf32>
    %cst_13 = arith.constant 0.000000e+00 : f32
    %18 = vector.broadcast %cst_13 : f32 to vector<1x4x1xf32>
    %19 = arith.maximumf %17, %18 : vector<1x4x1xf32>
    %cst_14 = arith.constant 9.99999974E-6 : f32
    %20 = vector.broadcast %cst_14 : f32 to vector<1x4x1xf32>
    %21 = arith.addf %20, %19 : vector<1x4x1xf32>
    %22 = math.sqrt %21 : vector<1x4x1xf32>
    %cst_15 = arith.constant 1.000000e+00 : f32
    %23 = vector.broadcast %cst_15 : f32 to vector<1x4x1xf32>
    %24 = arith.divf %23, %22 : vector<1x4x1xf32>
    %c0_16 = arith.constant 0 : index
    %c0_17 = arith.constant 0 : index
    %c0_18 = arith.constant 0 : index
    %25 = vector.load %arg2[%c0_16, %c0_17, %c0_18] : memref<1x4x1xf32, #tpu.memory_space<vmem>>, vector<1x4x1xf32>
    %26 = arith.mulf %25, %24 : vector<1x4x1xf32>
    %c0_19 = arith.constant 0 : index
    %c0_20 = arith.constant 0 : index
    %c0_21 = arith.constant 0 : index
    %27 = vector.load %arg3[%c0_19, %c0_20, %c0_21] : memref<1x4x1xf32, #tpu.memory_space<vmem>>, vector<1x4x1xf32>
    %28 = arith.mulf %11, %26 : vector<1x4x1xf32>
    %29 = arith.subf %27, %28 : vector<1x4x1xf32>
    %30 = vector.broadcast %26 : vector<1x4x1xf32> to vector<2x4x16xf32>
    %31 = arith.mulf %0, %30 : vector<2x4x16xf32>
    %32 = vector.broadcast %29 : vector<1x4x1xf32> to vector<2x4x16xf32>
    %33 = arith.addf %31, %32 : vector<2x4x16xf32>
    %c0_22 = arith.constant 0 : index
    %c0_23 = arith.constant 0 : index
    %c0_24 = arith.constant 0 : index
    %34 = vector.load %arg6[%c0_22, %c0_23, %c0_24] : memref<2x4x16xf32, #tpu.memory_space<vmem>>, vector<2x4x16xf32>
    tpu.vector_store %arg6[%c0_22, %c0_23, %c0_24], %33 {strides = array<i32>} : memref<2x4x16xf32, #tpu.memory_space<vmem>>, vector<2x4x16xf32>,
    return
  }
  func.func @transform_0(%arg0: i32) -> (i32, i32, i32) {
    %c0_i32 = arith.constant 0 : i32
    %c0_i32_0 = arith.constant 0 : i32
    %c0_i32_1 = arith.constant 0 : i32
    %c0_i32_2 = arith.constant 0 : i32
    return %c0_i32, %c0_i32_0, %c0_i32_1 : i32, i32, i32
  }
  func.func @transform_1(%arg0: i32) -> (i32, i32, i32) {
    %c0_i32 = arith.constant 0 : i32
    %c0_i32_0 = arith.constant 0 : i32
    %c0_i32_1 = arith.constant 0 : i32
    %c0_i32_2 = arith.constant 0 : i32
    return %c0_i32, %c0_i32_0, %c0_i32_1 : i32, i32, i32
  }
  func.func @transform_2(%arg0: i32) -> (i32, i32, i32) {
    %c0_i32 = arith.constant 0 : i32
    %c0_i32_0 = arith.constant 0 : i32
    %c0_i32_1 = arith.constant 0 : i32
    %c0_i32_2 = arith.constant 0 : i32
    return %c0_i32, %c0_i32_0, %c0_i32_1 : i32, i32, i32
  }
  func.func @transform_3(%arg0: i32) -> (i32, i32, i32) {
    %c0_i32 = arith.constant 0 : i32
    %c0_i32_0 = arith.constant 0 : i32
    %c0_i32_1 = arith.constant 0 : i32
    %c0_i32_2 = arith.constant 0 : i32
    return %c0_i32, %c0_i32_0, %c0_i32_1 : i32, i32, i32
  }
  func.func @transform_4(%arg0: i32) -> (i32, i32, i32) {
    %c0_i32 = arith.constant 0 : i32
    %c0_i32_0 = arith.constant 0 : i32
    %c0_i32_1 = arith.constant 0 : i32
    %c0_i32_2 = arith.constant 0 : i32
    return %c0_i32, %c0_i32_0, %c0_i32_1 : i32, i32, i32
  }
  func.func @transform_5(%arg0: i32) -> (i32, i32, i32) {
    %c0_i32 = arith.constant 0 : i32
    %c0_i32_0 = arith.constant 0 : i32
    %c0_i32_1 = arith.constant 0 : i32
    %c0_i32_2 = arith.constant 0 : i32
    return %c0_i32, %c0_i32_0, %c0_i32_1 : i32, i32, i32
  }
  func.func @transform_6(%arg0: i32) -> (i32, i32, i32) {
    %c0_i32 = arith.constant 0 : i32
    %c0_i32_0 = arith.constant 0 : i32
    %c0_i32_1 = arith.constant 0 : i32
    %c0_i32_2 = arith.constant 0 : i32
    return %c0_i32, %c0_i32_0, %c0_i32_1 : i32, i32, i32
  }
  func.func @transform_7(%arg0: i32) -> (i32, i32, i32) {
    %c0_i32 = arith.constant 0 : i32
    %c0_i32_0 = arith.constant 0 : i32
    %c0_i32_1 = arith.constant 0 : i32
    %c0_i32_2 = arith.constant 0 : i32
    return %c0_i32, %c0_i32_0, %c0_i32_1 : i32, i32, i32
  }
}

</mosaic_0001>

<llo_original>
// kernel: tpu_custom_call.1
$region0: #{tpu_custom_call.1}
  #allocation0 [shape = 'u32[]', space=smem, size = 0x4, offset = 0x4, fixed_abs, tag = 'smem constant byte address 0x4 - core index']
  #allocation1 [shape = 'u32[144,128]{1,0:T(1,128)}', space=vmem, size = 0x12000, scoped, tag = 'internal scratch']
  %s0 = inlined_call_operand.vmem [shape: f32[2,4,16], index: 0, kind: input, shape index: {}]
  %s1 = inlined_call_operand.vmem [shape: f32[1,4,1], index: 1, kind: input, shape index: {}]
  %s2 = inlined_call_operand.vmem [shape: f32[1,4,1], index: 2, kind: input, shape index: {}]
  %s3 = inlined_call_operand.vmem [shape: f32[1,4,1], index: 3, kind: input, shape index: {}]
  %s4 = inlined_call_operand.vmem [shape: f32[1,4,1], index: 4, kind: input, shape index: {}]
  %s5 = inlined_call_operand.hbm [shape: f32[2,4,16], index: 5, kind: output, shape index: {0}]
  %s6 = inlined_call_operand.vmem [shape: f32[1,4,1], index: 6, kind: output, shape index: {1}]
  %s7 = inlined_call_operand.vmem [shape: f32[1,4,1], index: 7, kind: output, shape index: {2}]
  %8 = xla_tuple %s5, %s6, %s7
  %s9 = sld [smem:[#allocation0]]
  $region46: #{tpu_custom_call.1} parent=0
    _
  %s11 = ssub.s32 1, %s9
  %s12 = scalar_select 0, %s11, %s9
  $region1: #{tpu_custom_call.1} parent=0
    #allocation2 [shape = 'u8[4096]{0}', space=vmem, size = 0x1000, scoped, tag = 'output window, operand 0, single buffered']
    #allocation3 [shape = 's32[1]{0}', space=sflag, size = 0x4, scoped, tag = 'scoped memory for tpu_custom_call.1']
    %13 = vsyncpa [#allocation3], 0
    // Predicated region
    $region2: #{tpu_custom_call.1} parent=1 // pred_check
      _
    $region3: #{tpu_custom_call.1} parent=1 // pred_check_branch
      %15 = sbr.rel (0) target = $region5
    $region4: #{tpu_custom_call.1} parent=1 // pred_region
      _
    $region5: #{tpu_custom_call.1} parent=1 // pred_fallthru
      _
    // Predicated region
    $region6: #{tpu_custom_call.1} parent=1 // pred_check
      _
    $region7: #{tpu_custom_call.1} parent=1 // pred_check_branch
      %17 = sbr.rel (0) target = $region9
    $region8: #{tpu_custom_call.1} parent=1 // pred_region
      _
    $region9: #{tpu_custom_call.1} parent=1 // pred_fallthru
      _
    // Predicated region
    $region10: #{tpu_custom_call.1} parent=1 // pred_check
      _
    $region11: #{tpu_custom_call.1} parent=1 // pred_check_branch
      %19 = sbr.rel (0) target = $region13
    $region12: #{tpu_custom_call.1} parent=1 // pred_region
      _
    $region13: #{tpu_custom_call.1} parent=1 // pred_fallthru
      _
    // Predicated region
    $region14: #{tpu_custom_call.1} parent=1 // pred_check
      _
    $region15: #{tpu_custom_call.1} parent=1 // pred_check_branch
      %21 = sbr.rel (0) target = $region17
    $region16: #{tpu_custom_call.1} parent=1 // pred_region
      _
    $region17: #{tpu_custom_call.1} parent=1 // pred_fallthru
      _
    // Predicated region
    $region18: #{tpu_custom_call.1} parent=1 // pred_check
      _
    $region19: #{tpu_custom_call.1} parent=1 // pred_check_branch
      %23 = sbr.rel (0) target = $region21
    $region20: #{tpu_custom_call.1} parent=1 // pred_region
      _
    $region21: #{tpu_custom_call.1} parent=1 // pred_fallthru
      _
    %v24 = vld [vmem:[%s0] sm:$0xf]
    %v25 = vld [vmem:[%s0 + $0x4] sm:$0xf]
    %vm26 = vcmask 125952
    %v27 = vsel %vm26, %v24, 0.0
    %28 = vadd.xlane.f32.xlu0 %v27
    %v29 = vpop.xlane.xlu0 %28
    %v30 = vsel %vm26, %v25, 0.0
    %31 = vadd.xlane.f32.xlu0 %v30
    %v32 = vpop.xlane.xlu0 %31
    %vm33 = vcmask 1043456
    %v34 = vsel %vm33, %v29, 0.0
    %v35 = vsel %vm33, %v32, 0.0
    %v36 = vadd.f32 %v34, %v35
    %v37 = vmul.f32 %v24, %v24
    %v38 = vmul.f32 %v25, %v25
    %v39 = vsel %vm26, %v37, 0.0
    %40 = vadd.xlane.f32.xlu0 %v39
    %v41 = vpop.xlane.xlu0 %40
    %v42 = vsel %vm26, %v38, 0.0
    %43 = vadd.xlane.f32.xlu0 %v42
    %v44 = vpop.xlane.xlu0 %43
    %v45 = vsel %vm33, %v41, 0.0
    %v46 = vsel %vm33, %v44, 0.0
    %v47 = vadd.f32 %v45, %v46
    %v48 = vmul.f32 %v36, 0.03125
    %v49 = vmul.f32 %v47, 0.03125
    %vm50 = vcmask 3072
    %51 = vst.msk [vmem:[%s6] sm:$0xf] %vm50, %v48
    %52 = vst.msk [vmem:[%s7] sm:$0xf] %vm50, %v49
    %v53 = vmul.f32 %v48, %v48
    %v54 = vsub.f32 %v49, %v53
    %v55 = vmax.f32 %v54, 0.0
    %v56 = vadd.f32 %v55, 1e-05
    %v57 = vrsqrt.pop %v56
    %v58 = vmul.f32 %v56, %v57
    %vm59 = vcmp.eq.f32.partialorder %v56, inf
    %v60 = vsel %vm59, %v56, %v58
    %vm61 = vcmp.eq.f32.partialorder %v56, 0.0
    %v62 = vand.u32 %v56, 2147483648
    %v63 = vsel %vm61, %v62, %v60
    %v64 = vrcp.pop %v63
    %v65 = vmul.f32 1.0, %v64
    %v66 = vld [vmem:[%s1] sm:$0xf]
    %v67 = vmul.f32 %v66, %v65
    %v68 = vld [vmem:[%s2] sm:$0xf]
    %v69 = vmul.f32 %v48, %v67
    %v70 = vsub.f32 %v68, %v69
    %72 = vset.pattern.permute.xlu0 0
    %73 = vperm.xlu0 %72, %v67
    %v74 = vpop.permute.xlu0 %73
    %v76 = vmul.f32 %v24, %v74
    %v77 = vmul.f32 %v25, %v74
    %79 = vset.pattern.permute.xlu0 0
    %80 = vperm.xlu0 %79, %v70
    %v81 = vpop.permute.xlu0 %80
    %v83 = vadd.f32 %v76, %v81
    %v84 = vadd.f32 %v77, %v81
    %85 = vst.msk [vmem:[#allocation2] sm:$0xf] %vm26, %v83
    %86 = vst.msk [vmem:[#allocation2 + $0x4] sm:$0xf] %vm26, %v84
    // Predicated region
    $region22: #{tpu_custom_call.1} parent=1 // pred_check
      _
    $region23: #{tpu_custom_call.1} parent=1 // pred_check_branch
      %88 = sbr.rel (0) target = $region25
    $region24: #{tpu_custom_call.1} parent=1 // pred_region
      %s90 = ssub.s32 128, 128
      %91 = vsyncadd [#allocation3], %s90
      %s92 = sshll.u32 [#allocation2], 4
      %s93 = int_to_ptr.vmem [resolvable:$true] %s92
      %98 = dma.vmem_to_hbm [thread:$0]  %s93, 128, %s5, [#allocation3], 64, 64, 4
    $region25: #{tpu_custom_call.1} parent=1 // pred_fallthru
      _
    // Predicated region
    $region26: #{tpu_custom_call.1} parent=1 // pred_check
      _
    $region27: #{tpu_custom_call.1} parent=1 // pred_check_branch
      %100 = sbr.rel (0) target = $region29
    $region28: #{tpu_custom_call.1} parent=1 // pred_region
      _
    $region29: #{tpu_custom_call.1} parent=1 // pred_fallthru
      _
    // Predicated region
    $region30: #{tpu_custom_call.1} parent=1 // pred_check
      _
    $region31: #{tpu_custom_call.1} parent=1 // pred_check_branch
      %102 = sbr.rel (0) target = $region33
    $region32: #{tpu_custom_call.1} parent=1 // pred_region
      _
    $region33: #{tpu_custom_call.1} parent=1 // pred_fallthru
      _
    // Predicated region
    $region34: #{tpu_custom_call.1} parent=1 // pred_check
      _
    $region35: #{tpu_custom_call.1} parent=1 // pred_check_branch
      %104 = sbr.rel (0) target = $region37
    $region36: #{tpu_custom_call.1} parent=1 // pred_region
      %105 = dma.done [#allocation3], 128
    $region37: #{tpu_custom_call.1} parent=1 // pred_fallthru
      _
    // Predicated region
    $region38: #{tpu_custom_call.1} parent=1 // pred_check
      _
    $region39: #{tpu_custom_call.1} parent=1 // pred_check_branch
      %107 = sbr.rel (0) target = $region41
    $region40: #{tpu_custom_call.1} parent=1 // pred_region
      _
    $region41: #{tpu_custom_call.1} parent=1 // pred_fallthru
      _
    // Predicated region
    $region42: #{tpu_custom_call.1} parent=1 // pred_check
      _
    $region43: #{tpu_custom_call.1} parent=1 // pred_check_branch
      %109 = sbr.rel (0) target = $region45
    $region44: #{tpu_custom_call.1} parent=1 // pred_region
      _
    $region45: #{tpu_custom_call.1} parent=1 // pred_fallthru
      _
    %110 = vsyncpa [#allocation3], 1

</llo_original>
